<compile_context>
chip_gen: v6e
topology: v6e:2x2x1
jax: 0.10.0
libtpu: 0.0.40
codegen_flags: <defaults>
</compile_context>

<pallas_src>
import functools

import jax
import jax.numpy as jnp
from jax.experimental import pallas as pl
from jax.experimental.pallas import tpu as pltpu


_MASK_RESIDENT_MAX_ROWS = 4096   # resident (rows,1) mask footprint <= ~2 MiB f32
_VMEM_LIMIT_BYTES = 32 << 20     # raise v5e's 16 MiB scoped default; safe on v6e/v7x
_VMEM_BUDGET_BYTES = 26 << 20    # live-buffer budget (headroom under the limit)
_TARGET_TILE_BYTES = 4 << 20     # ~4 MiB embeds tile amortizes ~0.35us/step overhead


def _node_drop_kernel(mask_ref, x_ref, o_ref, *, slice_rows):
    # Per-node 0/1 mask (same dtype as x) broadcast across the lane (dim) axis.
    # Pure VPU multiply -> kernel is DMA-bound.
    if slice_rows is None:
        m = mask_ref[...]                                   # per-block (or whole) mask
    else:
        # Whole mask is resident in VMEM (fetched once); take this tile's rows.
        start = pl.multiple_of(pl.program_id(0) * slice_rows, 8)
        m = mask_ref[pl.ds(start, slice_rows), :]
    o_ref[...] = x_ref[...] * m


def _sublane_multiple(itemsize):
    # f32 -> 8 rows/vreg, bf16 -> 16, int8/fp8 -> 32 (sub-32-bit packing).
    return 8 * max(1, 4 // max(1, itemsize))


def _round_up(x, m):
    return ((x + m - 1) // m) * m


def _pick_block_rows(node_num, dim, itemsize, mask_resident):
    """Row tile giving ~4 MiB embeds tiles while keeping live VMEM in budget."""
    sub = _sublane_multiple(itemsize)
    lane_row_bytes = _round_up(dim, 128) * itemsize          # VMEM bytes per x/out row
    per_row = 4 * lane_row_bytes                             # 2 x bufs + 2 out bufs
    budget = _VMEM_BUDGET_BYTES
    if mask_resident:
        budget -= 4 << 20                                    # resident mask (lane padded)
    else:
        per_row += 2 * 128 * itemsize                        # 2 lane-padded mask bufs
    rows_target = _TARGET_TILE_BYTES // max(1, dim * itemsize)
    rows_budget = budget // max(1, per_row)
    rows = max(sub, min(rows_target, rows_budget))
    if rows >= node_num:
        return node_num                                      # single-tile grid
    return max(sub, (rows // sub) * sub)                     # keep packing alignment


def _grid_semantics():
    # v7x has 2 TensorCores per chip: CORE_PARALLEL shards the row grid across
    # both.  On single-TC v5e/v6e, parallel vs arbitrary is a measured no-op.
    try:
        kind = jax.devices()[0].device_kind.lower()
        if "v7" in kind:
            return (pltpu.CORE_PARALLEL,)
    except Exception:
        pass
    return (pltpu.PARALLEL,)


def node_drop(embeds, keep_rate, seed=0, *, block_rows=None):
    """embeds: [node_num, dim] array. keep_rate: python float (not traced)."""
    if keep_rate == 1.0:          # module's early-return path (python-level check)
        return embeds
    keep_rate = float(keep_rate)  # raises if someone passes a traced value

    node_num, dim = embeds.shape
    itemsize = embeds.dtype.itemsize
    sub = _sublane_multiple(itemsize)

    # Bernoulli(keep_rate) per node, same construction as torch:
    # floor(uniform[0,1) + keep_rate) is 1 with prob keep_rate, else 0.
    key = jax.random.PRNGKey(seed)
    u = jax.random.uniform(key, (node_num, 1), dtype=jnp.float32)
    mask = jnp.floor(u + jnp.float32(keep_rate)).astype(embeds.dtype)

    # Small masks stay fully resident in VMEM (fetched once); big masks would
    # blow VMEM once lane-padded to 128, so they use a per-block spec instead.
    mask_resident = node_num <= _MASK_RESIDENT_MAX_ROWS

    if block_rows is None:
        block_rows = _pick_block_rows(node_num, dim, itemsize, mask_resident)
    block_rows = min(int(block_rows), node_num)
    if block_rows < node_num:
        block_rows = max(sub, (block_rows // sub) * sub)     # packing alignment
    grid_rows = pl.cdiv(node_num, block_rows)

    if mask_resident:
        padded_rows = grid_rows * block_rows                  # in-kernel ds stays in-bounds
        if padded_rows != node_num:
            mask = jnp.pad(mask, ((0, padded_rows - node_num), (0, 0)))
        mask_spec = pl.BlockSpec((padded_rows, 1), lambda i: (0, 0))  # fetched once
        slice_rows = block_rows if grid_rows > 1 else None
    else:
        mask_spec = pl.BlockSpec((block_rows, 1), lambda i: (i, 0))
        slice_rows = None

    kernel = functools.partial(_node_drop_kernel, slice_rows=slice_rows)

    return pl.pallas_call(
        kernel,
        out_shape=jax.ShapeDtypeStruct((node_num, dim), embeds.dtype),
        grid=(grid_rows,),
        in_specs=[
            mask_spec,                                             # per-node 0/1 mask
            pl.BlockSpec((block_rows, dim), lambda i: (i, 0)),     # embeds tile
        ],
        out_specs=pl.BlockSpec((block_rows, dim), lambda i: (i, 0)),
        compiler_params=pltpu.CompilerParams(
            dimension_semantics=_grid_semantics(),
            vmem_limit_bytes=_VMEM_LIMIT_BYTES,
        ),
    )(mask, embeds)


if __name__ == "__main__":
    # Synthetic config: user_num=32, item_num=32 -> node_num=64, embedding dim=128
    user_num, item_num, dim = 32, 32, 128
    node_num = user_num + item_num

    key = jax.random.PRNGKey(0)
    embeds = jax.random.normal(key, (node_num, dim), dtype=jnp.float32)

    out = jax.block_until_ready(node_drop(embeds, 0.8, seed=42))
    assert out.shape == embeds.shape and out.dtype == embeds.dtype
    row_zero = jnp.all(out == 0.0, axis=1)
    row_same = jnp.all(out == embeds, axis=1)
    assert bool(jnp.all(row_zero | row_same)), "each node row must be kept or fully dropped"

    # keep_rate == 1.0 path is identity.
    ident = jax.block_until_ready(node_drop(embeds, 1.0))
    assert bool(jnp.all(ident == embeds))

    # Ragged multi-tile path: tail tile + resident-mask padding + in-kernel slice.
    ragged = jax.random.normal(jax.random.PRNGKey(1), (200, 128), dtype=jnp.float32)
    r_out = jax.block_until_ready(node_drop(ragged, 0.5, seed=7, block_rows=64))
    rz = jnp.all(r_out == 0.0, axis=1)
    rs = jnp.all(r_out == ragged, axis=1)
    assert bool(jnp.all(rz | rs))
    assert r_out.shape == ragged.shape

    # bf16 path exercises the 16-row sublane-packing alignment.
    emb16 = jax.random.normal(jax.random.PRNGKey(2), (96, 128), dtype=jnp.bfloat16)
    o16 = jax.block_until_ready(node_drop(emb16, 0.7, seed=3, block_rows=32))
    z16 = jnp.all(o16 == 0, axis=1)
    s16 = jnp.all(o16 == emb16, axis=1)
    assert bool(jnp.all(z16 | s16))

    print("KERNEL_OK")
</pallas_src>

<mosaic_0001>
module attributes {stable_mosaic.version = 11 : i64} {
  func.func @_node_drop_kernel(%arg0: i32, %arg1: memref<64x1xf32, #tpu.memory_space<vmem>>, %arg2: memref<64x128xf32, #tpu.memory_space<vmem>>, %arg3: memref<64x128xf32, #tpu.memory_space<vmem>>) attributes {dimension_semantics = [#tpu.dimension_semantics<parallel>], iteration_bounds = array<i64: 1>, scalar_prefetch = 0 : i64, scratch_operands = 0 : i64, tpu.core_type = #tpu.core_type<tc>, window_params = [{pipeline_mode = #tpu.pipeline_mode<synchronous>, transform_indices = @transform_0, window_bounds = array<i64: 64, 1>}, {transform_indices = @transform_1, window_bounds = array<i64: 64, 128>}, {transform_indices = @transform_2, window_bounds = array<i64: 64, 128>}]} {
    %c0 = arith.constant 0 : index
    %c0_0 = arith.constant 0 : index
    %0 = vector.load %arg1[%c0, %c0_0] : memref<64x1xf32, #tpu.memory_space<vmem>>, vector<64x1xf32>
    %c0_1 = arith.constant 0 : index
    %c0_2 = arith.constant 0 : index
    %1 = vector.load %arg2[%c0_1, %c0_2] : memref<64x128xf32, #tpu.memory_space<vmem>>, vector<64x128xf32>
    %2 = vector.broadcast %0 : vector<64x1xf32> to vector<64x128xf32>
    %3 = arith.mulf %1, %2 : vector<64x128xf32>
    %c0_3 = arith.constant 0 : index
    %c0_4 = arith.constant 0 : index
    %4 = vector.load %arg3[%c0_3, %c0_4] : memref<64x128xf32, #tpu.memory_space<vmem>>, vector<64x128xf32>
    tpu.vector_store %arg3[%c0_3, %c0_4], %3 {strides = array<i32>} : memref<64x128xf32, #tpu.memory_space<vmem>>, vector<64x128xf32>,
    return
  }
  func.func @transform_0(%arg0: i32) -> (i32, i32) {
    %c0_i32 = arith.constant 0 : i32
    %c0_i32_0 = arith.constant 0 : i32
    %c0_i32_1 = arith.constant 0 : i32
    return %c0_i32, %c0_i32_0 : i32, i32
  }
  func.func @transform_1(%arg0: i32) -> (i32, i32) {
    %c0_i32 = arith.constant 0 : i32
    %c0_i32_0 = arith.constant 0 : i32
    return %arg0, %c0_i32 : i32, i32
  }
  func.func @transform_2(%arg0: i32) -> (i32, i32) {
    %c0_i32 = arith.constant 0 : i32
    %c0_i32_0 = arith.constant 0 : i32
    return %arg0, %c0_i32 : i32, i32
  }
}

</mosaic_0001>

<llo_original>
// kernel: tpu_custom_call.1
$region0: #{tpu_custom_call.1}
  #allocation0 [shape = 'u32[]', space=smem, size = 0x4, offset = 0x4, fixed_abs, tag = 'smem constant byte address 0x4 - core index']
  #allocation1 [shape = 'u32[144,128]{1,0:T(1,128)}', space=vmem, size = 0x12000, scoped, tag = 'internal scratch']
  %s0 = inlined_call_operand.vmem [shape: f32[64,1], index: 0, kind: input, shape index: {}]
  %s1 = inlined_call_operand.vmem [shape: f32[64,128], index: 1, kind: input, shape index: {}]
  %s2 = inlined_call_operand.hbm [shape: f32[64,128], index: 2, kind: output, shape index: {}]
  %s3 = sld [smem:[#allocation0]]
  $region18: #{tpu_custom_call.1} parent=0
    _
  %s5 = ssub.s32 1, %s3
  %s6 = scalar_select 0, %s5, %s3
  $region1: #{tpu_custom_call.1} parent=0
    #allocation2 [shape = 'u8[32768]{0}', space=vmem, size = 0x8000, scoped, tag = 'output window, operand 0, single buffered']
    #allocation3 [shape = 's32[1]{0}', space=sflag, size = 0x4, scoped, tag = 'scoped memory for tpu_custom_call.1']
    %7 = vsyncpa [#allocation3], 0
    // Predicated region
    $region2: #{tpu_custom_call.1} parent=1 // pred_check
      _
    $region3: #{tpu_custom_call.1} parent=1 // pred_check_branch
      %9 = sbr.rel (0) target = $region5
    $region4: #{tpu_custom_call.1} parent=1 // pred_region
      _
    $region5: #{tpu_custom_call.1} parent=1 // pred_fallthru
      _
    // Predicated region
    $region6: #{tpu_custom_call.1} parent=1 // pred_check
      _
    $region7: #{tpu_custom_call.1} parent=1 // pred_check_branch
      %11 = sbr.rel (0) target = $region9
    $region8: #{tpu_custom_call.1} parent=1 // pred_region
      _
    $region9: #{tpu_custom_call.1} parent=1 // pred_fallthru
      _
    %v12 = vld [vmem:[%s0] sm:$0xff]
    %v13 = vld [vmem:[%s0 + $0x8] sm:$0xff]
    %v14 = vld [vmem:[%s0 + $0x10] sm:$0xff]
    %v15 = vld [vmem:[%s0 + $0x18] sm:$0xff]
    %v16 = vld [vmem:[%s0 + $0x20] sm:$0xff]
    %v17 = vld [vmem:[%s0 + $0x28] sm:$0xff]
    %v18 = vld [vmem:[%s0 + $0x30] sm:$0xff]
    %v19 = vld [vmem:[%s0 + $0x38] sm:$0xff]
    %v20 = vld [vmem:[%s1] sm:$0xff]
    %v21 = vld [vmem:[%s1 + $0x8] sm:$0xff]
    %v22 = vld [vmem:[%s1 + $0x10] sm:$0xff]
    %v23 = vld [vmem:[%s1 + $0x18] sm:$0xff]
    %v24 = vld [vmem:[%s1 + $0x20] sm:$0xff]
    %v25 = vld [vmem:[%s1 + $0x28] sm:$0xff]
    %v26 = vld [vmem:[%s1 + $0x30] sm:$0xff]
    %v27 = vld [vmem:[%s1 + $0x38] sm:$0xff]
    %29 = vset.pattern.permute.xlu0 0
    %30 = vperm.xlu0 %29, %v12
    %v31 = vpop.permute.xlu0 %30
    %34 = vset.pattern.permute.xlu0 0
    %35 = vperm.xlu0 %34, %v13
    %v36 = vpop.permute.xlu0 %35
    %39 = vset.pattern.permute.xlu0 0
    %40 = vperm.xlu0 %39, %v14
    %v41 = vpop.permute.xlu0 %40
    %44 = vset.pattern.permute.xlu0 0
    %45 = vperm.xlu0 %44, %v15
    %v46 = vpop.permute.xlu0 %45
    %49 = vset.pattern.permute.xlu0 0
    %50 = vperm.xlu0 %49, %v16
    %v51 = vpop.permute.xlu0 %50
    %54 = vset.pattern.permute.xlu0 0
    %55 = vperm.xlu0 %54, %v17
    %v56 = vpop.permute.xlu0 %55
    %59 = vset.pattern.permute.xlu0 0
    %60 = vperm.xlu0 %59, %v18
    %v61 = vpop.permute.xlu0 %60
    %64 = vset.pattern.permute.xlu0 0
    %65 = vperm.xlu0 %64, %v19
    %v66 = vpop.permute.xlu0 %65
    %v68 = vmul.f32 %v20, %v31
    %v69 = vmul.f32 %v21, %v36
    %v70 = vmul.f32 %v22, %v41
    %v71 = vmul.f32 %v23, %v46
    %v72 = vmul.f32 %v24, %v51
    %v73 = vmul.f32 %v25, %v56
    %v74 = vmul.f32 %v26, %v61
    %v75 = vmul.f32 %v27, %v66
    %76 = vst [vmem:[#allocation2] sm:$0xff] %v68
    %77 = vst [vmem:[#allocation2 + $0x8] sm:$0xff] %v69
    %78 = vst [vmem:[#allocation2 + $0x10] sm:$0xff] %v70
    %79 = vst [vmem:[#allocation2 + $0x18] sm:$0xff] %v71
    %80 = vst [vmem:[#allocation2 + $0x20] sm:$0xff] %v72
    %81 = vst [vmem:[#allocation2 + $0x28] sm:$0xff] %v73
    %82 = vst [vmem:[#allocation2 + $0x30] sm:$0xff] %v74
    %83 = vst [vmem:[#allocation2 + $0x38] sm:$0xff] %v75
    // Predicated region
    $region10: #{tpu_custom_call.1} parent=1 // pred_check
      _
    $region11: #{tpu_custom_call.1} parent=1 // pred_check_branch
      %85 = sbr.rel (0) target = $region13
    $region12: #{tpu_custom_call.1} parent=1 // pred_region
      %s87 = ssub.s32 1024, 1024
      %88 = vsyncadd [#allocation3], %s87
      %s89 = sshll.u32 [#allocation2], 4
      %s90 = int_to_ptr.vmem [resolvable:$true] %s89
      %95 = dma.vmem_to_hbm [thread:$0]  %s90, 1024, %s2, [#allocation3], 128, 128, 8
    $region13: #{tpu_custom_call.1} parent=1 // pred_fallthru
      _
    // Predicated region
    $region14: #{tpu_custom_call.1} parent=1 // pred_check
      _
    $region15: #{tpu_custom_call.1} parent=1 // pred_check_branch
      %97 = sbr.rel (0) target = $region17
    $region16: #{tpu_custom_call.1} parent=1 // pred_region
      %98 = dma.done [#allocation3], 1024
    $region17: #{tpu_custom_call.1} parent=1 // pred_fallthru
      _
    %99 = vsyncpa [#allocation3], 1

</llo_original>
